<compile_context>
chip_gen: v7x
topology: tpu7x:2x2x1
jax: 0.10.0
libtpu: 0.0.40
codegen_flags: <defaults>
</compile_context>

<pallas_src>
import jax
import jax.numpy as jnp
import numpy as np
from jax.experimental import pallas as pl
from jax.experimental.pallas import tpu as pltpu


def _sigmoid(z):
    # sigmoid(z) == 0.5 * tanh(z/2) + 0.5 : single EUP op + one FMA (vs exp + add + divide).
    return 0.5 * jnp.tanh(0.5 * z) + 0.5


def _rnn_m2m_kernel(x_ref,       # (T*B, D)   compute dtype (bf16), time-major flattened
                    wstack_ref,  # (H+D, H)   compute dtype: [Waa.T ; Wax.T]
                    wya_ref,     # (H, Dout)  compute dtype: Wya.T
                    bab_ref,     # (1, H)     f32: baa + bax (folded)
                    bya_ref,     # (1, Dout)  f32: bya
                    out_ref):    # (To, B, Dout) f32, time-major
    To, B, Dout = out_ref.shape
    TB = x_ref.shape[0]
    T = TB // B
    H = wstack_ref.shape[1]

    # ---- Hoist every ref read once; weights/biases stay pinned in vregs across the loops. ----
    wstack = wstack_ref[...]                             # (H+D, H)
    waa = wstack[:H, :]                                  # (H, H)
    wax = wstack[H:, :]                                  # (D, H)
    wya = wya_ref[...]                                   # (H, Dout)
    cdt = wstack.dtype
    bab = jnp.broadcast_to(bab_ref[...], (B, H))         # one-time broadcasts, outside loops
    bya = jnp.broadcast_to(bya_ref[...], (B, Dout))

    # ---- All T input projections in ONE MXU pass, kept as a value in vregs. ----
    # Rows t*B:(t+1)*B == x_t @ Wax.T + (baa + bax).
    xproj = (jnp.dot(x_ref[...], wax, preferred_element_type=jnp.float32)
             + jnp.broadcast_to(bab_ref[...], (TB, H)))

    # ---- Input phase: only the hidden state matters (the per-step y is dead). ----
    # Peeled t = 0: a_0 == 0, so the a_0 @ Waa matmul is dead work on the critical path.
    a = _sigmoid(xproj[:B, :])
    for t in range(1, T):                                # static unroll, static slices
        a = _sigmoid(jnp.dot(a.astype(cdt), waa,
                             preferred_element_type=jnp.float32)
                     + xproj[t * B:(t + 1) * B, :])

    def emit_y(a_):
        return _sigmoid(jnp.dot(a_.astype(cdt), wya,
                                preferred_element_type=jnp.float32) + bya)

    y = emit_y(a)                                        # the single y that survives input phase

    # ---- Output phase: feed y back for To steps; 2 MXU passes per step via the packed weight. ----
    ys = []
    for _ in range(To):                                  # static unroll
        ay = jnp.concatenate([a, y], axis=-1).astype(cdt)          # (B, H + Dout)
        a = _sigmoid(jnp.dot(ay, wstack,
                             preferred_element_type=jnp.float32) + bab)
        y = emit_y(a)
        ys.append(y)

    # Single full-tile store: loop bodies stay pure vreg work (no per-step masked vst.msk).
    out_ref[...] = jnp.stack(ys, axis=0)


def prepare_params(params, compute_dtype=jnp.bfloat16):
    """One-time weight/bias prep (transpose, pack, fold, cast) -- done at load, not per call."""
    waa_t = jnp.asarray(params["aa_w"], jnp.float32).T               # (H, H)
    wax_t = jnp.asarray(params["ax_w"], jnp.float32).T               # (D, H)
    wya_t = jnp.asarray(params["ya_w"], jnp.float32).T               # (H, Dout)
    H = waa_t.shape[0]
    return {
        # Packed [Waa.T ; Wax.T]: output-phase recurrence is one dot on concat([a, y]).
        "wstack": jnp.concatenate([waa_t, wax_t], axis=0).astype(compute_dtype),
        "wya": wya_t.astype(compute_dtype),
        # Folded + row-shaped biases; the broadcast happens once inside the kernel.
        "bab": (jnp.asarray(params["aa_b"], jnp.float32)
                + jnp.asarray(params["ax_b"], jnp.float32)).reshape(1, H),
        "bya": jnp.asarray(params["ya_b"], jnp.float32).reshape(1, -1),
        "compute_dtype": compute_dtype,
    }


def many_to_many_rnn_forward(x, prepared, output_times):
    """x: (B, T, D).  Returns (B, output_times, output_size) exactly like the PyTorch module."""
    B, T, D = x.shape
    Dout = prepared["wya"].shape[1]
    assert D == Dout, "non-simultaneous mode requires input_size == output_size"

    # Time-major flatten (row t*B + b == x[b, t, :]); consumed by the kernel's single
    # projection matmul.  Done once per call, outside the kernel.
    x_flat = (jnp.transpose(x, (1, 0, 2))
              .reshape(T * B, D)
              .astype(prepared["compute_dtype"]))

    vmem = pl.BlockSpec(memory_space=pltpu.MemorySpace.VMEM)
    out_tm = pl.pallas_call(
        _rnn_m2m_kernel,
        out_shape=jax.ShapeDtypeStruct((output_times, B, Dout), jnp.float32),
        in_specs=[vmem] * 5,
        out_specs=vmem,
    )(x_flat, prepared["wstack"], prepared["wya"], prepared["bab"], prepared["bya"])

    # torch.cat along dim 0 gives (To*B, Dout) row-major == out_tm flattened; the module's
    # reshape(..., (B, To, Dout)) is the same raw row-major reinterpretation (time/batch
    # interleave quirk reproduced intentionally).
    return jnp.reshape(out_tm, (B, output_times, Dout))


def _reference_forward(x, params, output_times):
    """Pure-numpy (float64) replica of the PyTorch forward for verification."""
    x = np.asarray(x, np.float64)
    B, T, D = x.shape
    waa, baa = np.asarray(params["aa_w"], np.float64), np.asarray(params["aa_b"], np.float64)
    wax, bax = np.asarray(params["ax_w"], np.float64), np.asarray(params["ax_b"], np.float64)
    wya, bya = np.asarray(params["ya_w"], np.float64), np.asarray(params["ya_b"], np.float64)
    sig = lambda z: 1.0 / (1.0 + np.exp(-z))
    H = waa.shape[0]
    a = np.zeros((1, H))
    y = None
    for t in range(T):
        a = sig(a @ waa.T + baa + x[:, t, :] @ wax.T + bax)
        y = sig(a @ wya.T + bya)
    outs = []
    for _ in range(output_times):
        a = sig(a @ waa.T + baa + y @ wax.T + bax)
        y = sig(a @ wya.T + bya)
        outs.append(y)
    result = np.concatenate(outs, axis=0)                      # (To*B, Dout)
    return result.reshape(B, output_times, wya.shape[0])


if __name__ == "__main__":
    # Small, forward-consistent shapes: batch=2, seq(T)=8, input=output=16, hidden=32, To=4.
    B, T, D, H, To = 2, 8, 16, 32, 4

    key = jax.random.PRNGKey(0)
    ks = jax.random.split(key, 7)

    # Deterministic synthetic parameters (nn.Linear-style uniform init, not a checkpoint).
    def lin_init(kw, kb, fan_in, shape_w, shape_b):
        bound = 1.0 / np.sqrt(fan_in)
        w = jax.random.uniform(kw, shape_w, jnp.float32, -bound, bound)
        b = jax.random.uniform(kb, shape_b, jnp.float32, -bound, bound)
        return w, b

    aa_w, aa_b = lin_init(ks[0], ks[1], H, (H, H), (H,))   # torch convention: (out, in)
    ax_w, ax_b = lin_init(ks[2], ks[3], D, (H, D), (H,))
    ya_w, ya_b = lin_init(ks[4], ks[5], H, (D, H), (D,))
    params = {"aa_w": aa_w, "aa_b": aa_b,
              "ax_w": ax_w, "ax_b": ax_b,
              "ya_w": ya_w, "ya_b": ya_b}

    x = jax.random.normal(ks[6], (B, T, D), jnp.float32)

    prepared = prepare_params(params)                      # one-time pack/fold/cast
    out = many_to_many_rnn_forward(x, prepared, To)
    out = jax.block_until_ready(out)

    ref = _reference_forward(np.asarray(x), {k: np.asarray(v) for k, v in params.items()}, To)
    assert out.shape == (B, To, D), out.shape
    # bf16 matmul operands (f32 accumulate / activations) -> loosened tolerance vs f64 reference.
    assert np.allclose(np.asarray(out), ref, atol=3e-2, rtol=3e-2), "mismatch vs reference"

    print("KERNEL_OK")
</pallas_src>

<mosaic_0001>
module attributes {stable_mosaic.version = 11 : i64} {
  func.func @_rnn_m2m_kernel(%arg0: memref<16x16xbf16, #tpu.memory_space<vmem>>, %arg1: memref<48x32xbf16, #tpu.memory_space<vmem>>, %arg2: memref<32x16xbf16, #tpu.memory_space<vmem>>, %arg3: memref<1x32xf32, #tpu.memory_space<vmem>>, %arg4: memref<1x16xf32, #tpu.memory_space<vmem>>, %arg5: memref<4x2x16xf32, #tpu.memory_space<vmem>>) attributes {dimension_semantics = [], scalar_prefetch = 0 : i64, scratch_operands = 0 : i64, tpu.core_type = #tpu.core_type<tc>} {
    %c0 = arith.constant 0 : index
    %c0_0 = arith.constant 0 : index
    %0 = vector.load %arg1[%c0, %c0_0] : memref<48x32xbf16, #tpu.memory_space<vmem>>, vector<48x32xbf16>
    %1 = vector.extract_strided_slice %0 {offsets = [0, 0], sizes = [32, 32], strides = [1, 1]} : vector<48x32xbf16> to vector<32x32xbf16>
    %2 = vector.extract_strided_slice %0 {offsets = [32, 0], sizes = [16, 32], strides = [1, 1]} : vector<48x32xbf16> to vector<16x32xbf16>
    %c0_1 = arith.constant 0 : index
    %c0_2 = arith.constant 0 : index
    %3 = vector.load %arg2[%c0_1, %c0_2] : memref<32x16xbf16, #tpu.memory_space<vmem>>, vector<32x16xbf16>
    %c0_3 = arith.constant 0 : index
    %c0_4 = arith.constant 0 : index
    %4 = vector.load %arg3[%c0_3, %c0_4] : memref<1x32xf32, #tpu.memory_space<vmem>>, vector<1x32xf32>
    %5 = vector.shape_cast %4 : vector<1x32xf32> to vector<1x32xf32>
    %6 = vector.broadcast %5 : vector<1x32xf32> to vector<2x32xf32>
    %c0_5 = arith.constant 0 : index
    %c0_6 = arith.constant 0 : index
    %7 = vector.load %arg4[%c0_5, %c0_6] : memref<1x16xf32, #tpu.memory_space<vmem>>, vector<1x16xf32>
    %8 = vector.shape_cast %7 : vector<1x16xf32> to vector<1x16xf32>
    %9 = vector.broadcast %8 : vector<1x16xf32> to vector<2x16xf32>
    %c0_7 = arith.constant 0 : index
    %c0_8 = arith.constant 0 : index
    %10 = vector.load %arg0[%c0_7, %c0_8] : memref<16x16xbf16, #tpu.memory_space<vmem>>, vector<16x16xbf16>
    %cst = arith.constant dense<0.000000e+00> : vector<16x32xf32>
    %11 = tpu.matmul %10, %2, %cst {dimension_numbers = #tpu.dot_dimension_numbers<[1], [0], [0], [1], [0, 0, 1, 1], [], []>} : vector<16x16xbf16>, vector<16x32xbf16>, vector<16x32xf32> -> vector<16x32xf32>
    %c0_9 = arith.constant 0 : index
    %c0_10 = arith.constant 0 : index
    %12 = vector.load %arg3[%c0_9, %c0_10] : memref<1x32xf32, #tpu.memory_space<vmem>>, vector<1x32xf32>
    %13 = vector.shape_cast %12 : vector<1x32xf32> to vector<1x32xf32>
    %14 = vector.broadcast %13 : vector<1x32xf32> to vector<16x32xf32>
    %15 = arith.addf %11, %14 : vector<16x32xf32>
    %16 = vector.extract_strided_slice %15 {offsets = [0, 0], sizes = [2, 32], strides = [1, 1]} : vector<16x32xf32> to vector<2x32xf32>
    %cst_11 = arith.constant 5.000000e-01 : f32
    %17 = vector.broadcast %cst_11 : f32 to vector<2x32xf32>
    %18 = arith.mulf %17, %16 : vector<2x32xf32>
    %19 = math.tanh %18 : vector<2x32xf32>
    %cst_12 = arith.constant 5.000000e-01 : f32
    %20 = vector.broadcast %cst_12 : f32 to vector<2x32xf32>
    %21 = arith.mulf %20, %19 : vector<2x32xf32>
    %cst_13 = arith.constant 5.000000e-01 : f32
    %22 = vector.broadcast %cst_13 : f32 to vector<2x32xf32>
    %23 = arith.addf %21, %22 : vector<2x32xf32>
    %24 = arith.truncf %23 : vector<2x32xf32> to vector<2x32xbf16>
    %cst_14 = arith.constant dense<0.000000e+00> : vector<2x32xf32>
    %25 = tpu.matmul %24, %1, %cst_14 {dimension_numbers = #tpu.dot_dimension_numbers<[1], [0], [0], [1], [0, 0, 1, 1], [], []>} : vector<2x32xbf16>, vector<32x32xbf16>, vector<2x32xf32> -> vector<2x32xf32>
    %26 = vector.extract_strided_slice %15 {offsets = [2, 0], sizes = [2, 32], strides = [1, 1]} : vector<16x32xf32> to vector<2x32xf32>
    %27 = arith.addf %25, %26 : vector<2x32xf32>
    %cst_15 = arith.constant 5.000000e-01 : f32
    %28 = vector.broadcast %cst_15 : f32 to vector<2x32xf32>
    %29 = arith.mulf %28, %27 : vector<2x32xf32>
    %30 = math.tanh %29 : vector<2x32xf32>
    %cst_16 = arith.constant 5.000000e-01 : f32
    %31 = vector.broadcast %cst_16 : f32 to vector<2x32xf32>
    %32 = arith.mulf %31, %30 : vector<2x32xf32>
    %cst_17 = arith.constant 5.000000e-01 : f32
    %33 = vector.broadcast %cst_17 : f32 to vector<2x32xf32>
    %34 = arith.addf %32, %33 : vector<2x32xf32>
    %35 = arith.truncf %34 : vector<2x32xf32> to vector<2x32xbf16>
    %cst_18 = arith.constant dense<0.000000e+00> : vector<2x32xf32>
    %36 = tpu.matmul %35, %1, %cst_18 {dimension_numbers = #tpu.dot_dimension_numbers<[1], [0], [0], [1], [0, 0, 1, 1], [], []>} : vector<2x32xbf16>, vector<32x32xbf16>, vector<2x32xf32> -> vector<2x32xf32>
    %37 = vector.extract_strided_slice %15 {offsets = [4, 0], sizes = [2, 32], strides = [1, 1]} : vector<16x32xf32> to vector<2x32xf32>
    %38 = arith.addf %36, %37 : vector<2x32xf32>
    %cst_19 = arith.constant 5.000000e-01 : f32
    %39 = vector.broadcast %cst_19 : f32 to vector<2x32xf32>
    %40 = arith.mulf %39, %38 : vector<2x32xf32>
    %41 = math.tanh %40 : vector<2x32xf32>
    %cst_20 = arith.constant 5.000000e-01 : f32
    %42 = vector.broadcast %cst_20 : f32 to vector<2x32xf32>
    %43 = arith.mulf %42, %41 : vector<2x32xf32>
    %cst_21 = arith.constant 5.000000e-01 : f32
    %44 = vector.broadcast %cst_21 : f32 to vector<2x32xf32>
    %45 = arith.addf %43, %44 : vector<2x32xf32>
    %46 = arith.truncf %45 : vector<2x32xf32> to vector<2x32xbf16>
    %cst_22 = arith.constant dense<0.000000e+00> : vector<2x32xf32>
    %47 = tpu.matmul %46, %1, %cst_22 {dimension_numbers = #tpu.dot_dimension_numbers<[1], [0], [0], [1], [0, 0, 1, 1], [], []>} : vector<2x32xbf16>, vector<32x32xbf16>, vector<2x32xf32> -> vector<2x32xf32>
    %48 = vector.extract_strided_slice %15 {offsets = [6, 0], sizes = [2, 32], strides = [1, 1]} : vector<16x32xf32> to vector<2x32xf32>
    %49 = arith.addf %47, %48 : vector<2x32xf32>
    %cst_23 = arith.constant 5.000000e-01 : f32
    %50 = vector.broadcast %cst_23 : f32 to vector<2x32xf32>
    %51 = arith.mulf %50, %49 : vector<2x32xf32>
    %52 = math.tanh %51 : vector<2x32xf32>
    %cst_24 = arith.constant 5.000000e-01 : f32
    %53 = vector.broadcast %cst_24 : f32 to vector<2x32xf32>
    %54 = arith.mulf %53, %52 : vector<2x32xf32>
    %cst_25 = arith.constant 5.000000e-01 : f32
    %55 = vector.broadcast %cst_25 : f32 to vector<2x32xf32>
    %56 = arith.addf %54, %55 : vector<2x32xf32>
    %57 = arith.truncf %56 : vector<2x32xf32> to vector<2x32xbf16>
    %cst_26 = arith.constant dense<0.000000e+00> : vector<2x32xf32>
    %58 = tpu.matmul %57, %1, %cst_26 {dimension_numbers = #tpu.dot_dimension_numbers<[1], [0], [0], [1], [0, 0, 1, 1], [], []>} : vector<2x32xbf16>, vector<32x32xbf16>, vector<2x32xf32> -> vector<2x32xf32>
    %59 = vector.extract_strided_slice %15 {offsets = [8, 0], sizes = [2, 32], strides = [1, 1]} : vector<16x32xf32> to vector<2x32xf32>
    %60 = arith.addf %58, %59 : vector<2x32xf32>
    %cst_27 = arith.constant 5.000000e-01 : f32
    %61 = vector.broadcast %cst_27 : f32 to vector<2x32xf32>
    %62 = arith.mulf %61, %60 : vector<2x32xf32>
    %63 = math.tanh %62 : vector<2x32xf32>
    %cst_28 = arith.constant 5.000000e-01 : f32
    %64 = vector.broadcast %cst_28 : f32 to vector<2x32xf32>
    %65 = arith.mulf %64, %63 : vector<2x32xf32>
    %cst_29 = arith.constant 5.000000e-01 : f32
    %66 = vector.broadcast %cst_29 : f32 to vector<2x32xf32>
    %67 = arith.addf %65, %66 : vector<2x32xf32>
    %68 = arith.truncf %67 : vector<2x32xf32> to vector<2x32xbf16>
    %cst_30 = arith.constant dense<0.000000e+00> : vector<2x32xf32>
    %69 = tpu.matmul %68, %1, %cst_30 {dimension_numbers = #tpu.dot_dimension_numbers<[1], [0], [0], [1], [0, 0, 1, 1], [], []>} : vector<2x32xbf16>, vector<32x32xbf16>, vector<2x32xf32> -> vector<2x32xf32>
    %70 = vector.extract_strided_slice %15 {offsets = [10, 0], sizes = [2, 32], strides = [1, 1]} : vector<16x32xf32> to vector<2x32xf32>
    %71 = arith.addf %69, %70 : vector<2x32xf32>
    %cst_31 = arith.constant 5.000000e-01 : f32
    %72 = vector.broadcast %cst_31 : f32 to vector<2x32xf32>
    %73 = arith.mulf %72, %71 : vector<2x32xf32>
    %74 = math.tanh %73 : vector<2x32xf32>
    %cst_32 = arith.constant 5.000000e-01 : f32
    %75 = vector.broadcast %cst_32 : f32 to vector<2x32xf32>
    %76 = arith.mulf %75, %74 : vector<2x32xf32>
    %cst_33 = arith.constant 5.000000e-01 : f32
    %77 = vector.broadcast %cst_33 : f32 to vector<2x32xf32>
    %78 = arith.addf %76, %77 : vector<2x32xf32>
    %79 = arith.truncf %78 : vector<2x32xf32> to vector<2x32xbf16>
    %cst_34 = arith.constant dense<0.000000e+00> : vector<2x32xf32>
    %80 = tpu.matmul %79, %1, %cst_34 {dimension_numbers = #tpu.dot_dimension_numbers<[1], [0], [0], [1], [0, 0, 1, 1], [], []>} : vector<2x32xbf16>, vector<32x32xbf16>, vector<2x32xf32> -> vector<2x32xf32>
    %81 = vector.extract_strided_slice %15 {offsets = [12, 0], sizes = [2, 32], strides = [1, 1]} : vector<16x32xf32> to vector<2x32xf32>
    %82 = arith.addf %80, %81 : vector<2x32xf32>
    %cst_35 = arith.constant 5.000000e-01 : f32
    %83 = vector.broadcast %cst_35 : f32 to vector<2x32xf32>
    %84 = arith.mulf %83, %82 : vector<2x32xf32>
    %85 = math.tanh %84 : vector<2x32xf32>
    %cst_36 = arith.constant 5.000000e-01 : f32
    %86 = vector.broadcast %cst_36 : f32 to vector<2x32xf32>
    %87 = arith.mulf %86, %85 : vector<2x32xf32>
    %cst_37 = arith.constant 5.000000e-01 : f32
    %88 = vector.broadcast %cst_37 : f32 to vector<2x32xf32>
    %89 = arith.addf %87, %88 : vector<2x32xf32>
    %90 = arith.truncf %89 : vector<2x32xf32> to vector<2x32xbf16>
    %cst_38 = arith.constant dense<0.000000e+00> : vector<2x32xf32>
    %91 = tpu.matmul %90, %1, %cst_38 {dimension_numbers = #tpu.dot_dimension_numbers<[1], [0], [0], [1], [0, 0, 1, 1], [], []>} : vector<2x32xbf16>, vector<32x32xbf16>, vector<2x32xf32> -> vector<2x32xf32>
    %92 = vector.extract_strided_slice %15 {offsets = [14, 0], sizes = [2, 32], strides = [1, 1]} : vector<16x32xf32> to vector<2x32xf32>
    %93 = arith.addf %91, %92 : vector<2x32xf32>
    %cst_39 = arith.constant 5.000000e-01 : f32
    %94 = vector.broadcast %cst_39 : f32 to vector<2x32xf32>
    %95 = arith.mulf %94, %93 : vector<2x32xf32>
    %96 = math.tanh %95 : vector<2x32xf32>
    %cst_40 = arith.constant 5.000000e-01 : f32
    %97 = vector.broadcast %cst_40 : f32 to vector<2x32xf32>
    %98 = arith.mulf %97, %96 : vector<2x32xf32>
    %cst_41 = arith.constant 5.000000e-01 : f32
    %99 = vector.broadcast %cst_41 : f32 to vector<2x32xf32>
    %100 = arith.addf %98, %99 : vector<2x32xf32>
    %101 = arith.truncf %100 : vector<2x32xf32> to vector<2x32xbf16>
    %cst_42 = arith.constant dense<0.000000e+00> : vector<2x16xf32>
    %102 = tpu.matmul %101, %3, %cst_42 {dimension_numbers = #tpu.dot_dimension_numbers<[1], [0], [0], [1], [0, 0, 1, 1], [], []>} : vector<2x32xbf16>, vector<32x16xbf16>, vector<2x16xf32> -> vector<2x16xf32>
    %103 = arith.addf %102, %9 : vector<2x16xf32>
    %cst_43 = arith.constant 5.000000e-01 : f32
    %104 = vector.broadcast %cst_43 : f32 to vector<2x16xf32>
    %105 = arith.mulf %104, %103 : vector<2x16xf32>
    %106 = math.tanh %105 : vector<2x16xf32>
    %cst_44 = arith.constant 5.000000e-01 : f32
    %107 = vector.broadcast %cst_44 : f32 to vector<2x16xf32>
    %108 = arith.mulf %107, %106 : vector<2x16xf32>
    %cst_45 = arith.constant 5.000000e-01 : f32
    %109 = vector.broadcast %cst_45 : f32 to vector<2x16xf32>
    %110 = arith.addf %108, %109 : vector<2x16xf32>
    %111 = tpu.concatenate %100, %110 in 1 : vector<2x32xf32>, vector<2x16xf32> -> vector<2x48xf32>
    %112 = arith.truncf %111 : vector<2x48xf32> to vector<2x48xbf16>
    %cst_46 = arith.constant dense<0.000000e+00> : vector<2x32xf32>
    %113 = tpu.matmul %112, %0, %cst_46 {dimension_numbers = #tpu.dot_dimension_numbers<[1], [0], [0], [1], [0, 0, 1, 1], [], []>} : vector<2x48xbf16>, vector<48x32xbf16>, vector<2x32xf32> -> vector<2x32xf32>
    %114 = arith.addf %113, %6 : vector<2x32xf32>
    %cst_47 = arith.constant 5.000000e-01 : f32
    %115 = vector.broadcast %cst_47 : f32 to vector<2x32xf32>
    %116 = arith.mulf %115, %114 : vector<2x32xf32>
    %117 = math.tanh %116 : vector<2x32xf32>
    %cst_48 = arith.constant 5.000000e-01 : f32
    %118 = vector.broadcast %cst_48 : f32 to vector<2x32xf32>
    %119 = arith.mulf %118, %117 : vector<2x32xf32>
    %cst_49 = arith.constant 5.000000e-01 : f32
    %120 = vector.broadcast %cst_49 : f32 to vector<2x32xf32>
    %121 = arith.addf %119, %120 : vector<2x32xf32>
    %122 = arith.truncf %121 : vector<2x32xf32> to vector<2x32xbf16>
    %cst_50 = arith.constant dense<0.000000e+00> : vector<2x16xf32>
    %123 = tpu.matmul %122, %3, %cst_50 {dimension_numbers = #tpu.dot_dimension_numbers<[1], [0], [0], [1], [0, 0, 1, 1], [], []>} : vector<2x32xbf16>, vector<32x16xbf16>, vector<2x16xf32> -> vector<2x16xf32>
    %124 = arith.addf %123, %9 : vector<2x16xf32>
    %cst_51 = arith.constant 5.000000e-01 : f32
    %125 = vector.broadcast %cst_51 : f32 to vector<2x16xf32>
    %126 = arith.mulf %125, %124 : vector<2x16xf32>
    %127 = math.tanh %126 : vector<2x16xf32>
    %cst_52 = arith.constant 5.000000e-01 : f32
    %128 = vector.broadcast %cst_52 : f32 to vector<2x16xf32>
    %129 = arith.mulf %128, %127 : vector<2x16xf32>
    %cst_53 = arith.constant 5.000000e-01 : f32
    %130 = vector.broadcast %cst_53 : f32 to vector<2x16xf32>
    %131 = arith.addf %129, %130 : vector<2x16xf32>
    %132 = tpu.concatenate %121, %131 in 1 : vector<2x32xf32>, vector<2x16xf32> -> vector<2x48xf32>
    %133 = arith.truncf %132 : vector<2x48xf32> to vector<2x48xbf16>
    %cst_54 = arith.constant dense<0.000000e+00> : vector<2x32xf32>
    %134 = tpu.matmul %133, %0, %cst_54 {dimension_numbers = #tpu.dot_dimension_numbers<[1], [0], [0], [1], [0, 0, 1, 1], [], []>} : vector<2x48xbf16>, vector<48x32xbf16>, vector<2x32xf32> -> vector<2x32xf32>
    %135 = arith.addf %134, %6 : vector<2x32xf32>
    %cst_55 = arith.constant 5.000000e-01 : f32
    %136 = vector.broadcast %cst_55 : f32 to vector<2x32xf32>
    %137 = arith.mulf %136, %135 : vector<2x32xf32>
    %138 = math.tanh %137 : vector<2x32xf32>
    %cst_56 = arith.constant 5.000000e-01 : f32
    %139 = vector.broadcast %cst_56 : f32 to vector<2x32xf32>
    %140 = arith.mulf %139, %138 : vector<2x32xf32>
    %cst_57 = arith.constant 5.000000e-01 : f32
    %141 = vector.broadcast %cst_57 : f32 to vector<2x32xf32>
    %142 = arith.addf %140, %141 : vector<2x32xf32>
    %143 = arith.truncf %142 : vector<2x32xf32> to vector<2x32xbf16>
    %cst_58 = arith.constant dense<0.000000e+00> : vector<2x16xf32>
    %144 = tpu.matmul %143, %3, %cst_58 {dimension_numbers = #tpu.dot_dimension_numbers<[1], [0], [0], [1], [0, 0, 1, 1], [], []>} : vector<2x32xbf16>, vector<32x16xbf16>, vector<2x16xf32> -> vector<2x16xf32>
    %145 = arith.addf %144, %9 : vector<2x16xf32>
    %cst_59 = arith.constant 5.000000e-01 : f32
    %146 = vector.broadcast %cst_59 : f32 to vector<2x16xf32>
    %147 = arith.mulf %146, %145 : vector<2x16xf32>
    %148 = math.tanh %147 : vector<2x16xf32>
    %cst_60 = arith.constant 5.000000e-01 : f32
    %149 = vector.broadcast %cst_60 : f32 to vector<2x16xf32>
    %150 = arith.mulf %149, %148 : vector<2x16xf32>
    %cst_61 = arith.constant 5.000000e-01 : f32
    %151 = vector.broadcast %cst_61 : f32 to vector<2x16xf32>
    %152 = arith.addf %150, %151 : vector<2x16xf32>
    %153 = tpu.concatenate %142, %152 in 1 : vector<2x32xf32>, vector<2x16xf32> -> vector<2x48xf32>
    %154 = arith.truncf %153 : vector<2x48xf32> to vector<2x48xbf16>
    %cst_62 = arith.constant dense<0.000000e+00> : vector<2x32xf32>
    %155 = tpu.matmul %154, %0, %cst_62 {dimension_numbers = #tpu.dot_dimension_numbers<[1], [0], [0], [1], [0, 0, 1, 1], [], []>} : vector<2x48xbf16>, vector<48x32xbf16>, vector<2x32xf32> -> vector<2x32xf32>
    %156 = arith.addf %155, %6 : vector<2x32xf32>
    %cst_63 = arith.constant 5.000000e-01 : f32
    %157 = vector.broadcast %cst_63 : f32 to vector<2x32xf32>
    %158 = arith.mulf %157, %156 : vector<2x32xf32>
    %159 = math.tanh %158 : vector<2x32xf32>
    %cst_64 = arith.constant 5.000000e-01 : f32
    %160 = vector.broadcast %cst_64 : f32 to vector<2x32xf32>
    %161 = arith.mulf %160, %159 : vector<2x32xf32>
    %cst_65 = arith.constant 5.000000e-01 : f32
    %162 = vector.broadcast %cst_65 : f32 to vector<2x32xf32>
    %163 = arith.addf %161, %162 : vector<2x32xf32>
    %164 = arith.truncf %163 : vector<2x32xf32> to vector<2x32xbf16>
    %cst_66 = arith.constant dense<0.000000e+00> : vector<2x16xf32>
    %165 = tpu.matmul %164, %3, %cst_66 {dimension_numbers = #tpu.dot_dimension_numbers<[1], [0], [0], [1], [0, 0, 1, 1], [], []>} : vector<2x32xbf16>, vector<32x16xbf16>, vector<2x16xf32> -> vector<2x16xf32>
    %166 = arith.addf %165, %9 : vector<2x16xf32>
    %cst_67 = arith.constant 5.000000e-01 : f32
    %167 = vector.broadcast %cst_67 : f32 to vector<2x16xf32>
    %168 = arith.mulf %167, %166 : vector<2x16xf32>
    %169 = math.tanh %168 : vector<2x16xf32>
    %cst_68 = arith.constant 5.000000e-01 : f32
    %170 = vector.broadcast %cst_68 : f32 to vector<2x16xf32>
    %171 = arith.mulf %170, %169 : vector<2x16xf32>
    %cst_69 = arith.constant 5.000000e-01 : f32
    %172 = vector.broadcast %cst_69 : f32 to vector<2x16xf32>
    %173 = arith.addf %171, %172 : vector<2x16xf32>
    %174 = tpu.concatenate %163, %173 in 1 : vector<2x32xf32>, vector<2x16xf32> -> vector<2x48xf32>
    %175 = arith.truncf %174 : vector<2x48xf32> to vector<2x48xbf16>
    %cst_70 = arith.constant dense<0.000000e+00> : vector<2x32xf32>
    %176 = tpu.matmul %175, %0, %cst_70 {dimension_numbers = #tpu.dot_dimension_numbers<[1], [0], [0], [1], [0, 0, 1, 1], [], []>} : vector<2x48xbf16>, vector<48x32xbf16>, vector<2x32xf32> -> vector<2x32xf32>
    %177 = arith.addf %176, %6 : vector<2x32xf32>
    %cst_71 = arith.constant 5.000000e-01 : f32
    %178 = vector.broadcast %cst_71 : f32 to vector<2x32xf32>
    %179 = arith.mulf %178, %177 : vector<2x32xf32>
    %180 = math.tanh %179 : vector<2x32xf32>
    %cst_72 = arith.constant 5.000000e-01 : f32
    %181 = vector.broadcast %cst_72 : f32 to vector<2x32xf32>
    %182 = arith.mulf %181, %180 : vector<2x32xf32>
    %cst_73 = arith.constant 5.000000e-01 : f32
    %183 = vector.broadcast %cst_73 : f32 to vector<2x32xf32>
    %184 = arith.addf %182, %183 : vector<2x32xf32>
    %185 = arith.truncf %184 : vector<2x32xf32> to vector<2x32xbf16>
    %cst_74 = arith.constant dense<0.000000e+00> : vector<2x16xf32>
    %186 = tpu.matmul %185, %3, %cst_74 {dimension_numbers = #tpu.dot_dimension_numbers<[1], [0], [0], [1], [0, 0, 1, 1], [], []>} : vector<2x32xbf16>, vector<32x16xbf16>, vector<2x16xf32> -> vector<2x16xf32>
    %187 = arith.addf %186, %9 : vector<2x16xf32>
    %cst_75 = arith.constant 5.000000e-01 : f32
    %188 = vector.broadcast %cst_75 : f32 to vector<2x16xf32>
    %189 = arith.mulf %188, %187 : vector<2x16xf32>
    %190 = math.tanh %189 : vector<2x16xf32>
    %cst_76 = arith.constant 5.000000e-01 : f32
    %191 = vector.broadcast %cst_76 : f32 to vector<2x16xf32>
    %192 = arith.mulf %191, %190 : vector<2x16xf32>
    %cst_77 = arith.constant 5.000000e-01 : f32
    %193 = vector.broadcast %cst_77 : f32 to vector<2x16xf32>
    %194 = arith.addf %192, %193 : vector<2x16xf32>
    %195 = vector.shape_cast %131 : vector<2x16xf32> to vector<1x2x16xf32>
    %196 = vector.shape_cast %152 : vector<2x16xf32> to vector<1x2x16xf32>
    %197 = vector.shape_cast %173 : vector<2x16xf32> to vector<1x2x16xf32>
    %198 = vector.shape_cast %194 : vector<2x16xf32> to vector<1x2x16xf32>
    %199 = tpu.concatenate %195, %196, %197, %198 in 0 : vector<1x2x16xf32>, vector<1x2x16xf32>, vector<1x2x16xf32>, vector<1x2x16xf32> -> vector<4x2x16xf32>
    %c0_78 = arith.constant 0 : index
    %c0_79 = arith.constant 0 : index
    %c0_80 = arith.constant 0 : index
    %200 = vector.load %arg5[%c0_78, %c0_79, %c0_80] : memref<4x2x16xf32, #tpu.memory_space<vmem>>, vector<4x2x16xf32>
    tpu.vector_store %arg5[%c0_78, %c0_79, %c0_80], %199 {strides = array<i32>} : memref<4x2x16xf32, #tpu.memory_space<vmem>>, vector<4x2x16xf32>,
    return
  }
}

</mosaic_0001>

<llo_original>
// kernel: tpu_custom_call.1
$region0: #{tpu_custom_call.1}
  #allocation0 [shape = 'u32[]', space=smem, size = 0x4, offset = 0x4, fixed_abs, tag = 'smem constant byte address 0x4 - core index']
  #allocation1 [shape = 'u32[144,128]{1,0:T(1,128)}', space=vmem, size = 0x12000, scoped, tag = 'internal scratch']
  %s0 = inlined_call_operand.vmem [shape: bf16[16,16], index: 0, kind: input, shape index: {}]
  %s1 = inlined_call_operand.vmem [shape: bf16[48,32], index: 1, kind: input, shape index: {}]
  %s2 = inlined_call_operand.vmem [shape: bf16[32,16], index: 2, kind: input, shape index: {}]
  %s3 = inlined_call_operand.vmem [shape: f32[1,32], index: 3, kind: input, shape index: {}]
  %s4 = inlined_call_operand.vmem [shape: f32[1,16], index: 4, kind: input, shape index: {}]
  %s5 = inlined_call_operand.hbm [shape: f32[4,2,16], index: 5, kind: output, shape index: {}]
  %s6 = sld [smem:[#allocation0]]
  $region30: #{tpu_custom_call.1} parent=0
    _
  %s8 = ssub.s32 1, %s6
  %s9 = scalar_select 0, %s8, %s6
  $region1: #{tpu_custom_call.1} parent=0
    #allocation2 [shape = 'u8[4096]{0}', space=vmem, size = 0x1000, scoped, tag = 'output window, operand 0, single buffered']
    #allocation3 [shape = 's32[1]{0}', space=sflag, size = 0x4, scoped, tag = 'scoped memory for tpu_custom_call.1']
    %10 = vsyncpa [#allocation3], 0
    // Predicated region
    $region2: #{tpu_custom_call.1} parent=1 // pred_check
      _
    $region3: #{tpu_custom_call.1} parent=1 // pred_check_branch
      %12 = sbr.rel (0) target = $region5
    $region4: #{tpu_custom_call.1} parent=1 // pred_region
      _
    $region5: #{tpu_custom_call.1} parent=1 // pred_fallthru
      _
    // Predicated region
    $region6: #{tpu_custom_call.1} parent=1 // pred_check
      _
    $region7: #{tpu_custom_call.1} parent=1 // pred_check_branch
      %14 = sbr.rel (0) target = $region9
    $region8: #{tpu_custom_call.1} parent=1 // pred_region
      _
    $region9: #{tpu_custom_call.1} parent=1 // pred_fallthru
      _
    // Predicated region
    $region10: #{tpu_custom_call.1} parent=1 // pred_check
      _
    $region11: #{tpu_custom_call.1} parent=1 // pred_check_branch
      %16 = sbr.rel (0) target = $region13
    $region12: #{tpu_custom_call.1} parent=1 // pred_region
      _
    $region13: #{tpu_custom_call.1} parent=1 // pred_fallthru
      _
    // Predicated region
    $region14: #{tpu_custom_call.1} parent=1 // pred_check
      _
    $region15: #{tpu_custom_call.1} parent=1 // pred_check_branch
      %18 = sbr.rel (0) target = $region17
    $region16: #{tpu_custom_call.1} parent=1 // pred_region
      _
    $region17: #{tpu_custom_call.1} parent=1 // pred_fallthru
      _
    // Predicated region
    $region18: #{tpu_custom_call.1} parent=1 // pred_check
      _
    $region19: #{tpu_custom_call.1} parent=1 // pred_check_branch
      %20 = sbr.rel (0) target = $region21
    $region20: #{tpu_custom_call.1} parent=1 // pred_region
      _
    $region21: #{tpu_custom_call.1} parent=1 // pred_fallthru
      _
    %v22 = vld [vmem:[%s1] sm:$0xf]
    %v23 = vld [vmem:[%s1 + $0x4] sm:$0xf]
    %v24 = vld [vmem:[%s1 + $0x8] sm:$0xf]
    %v25 = vld [vmem:[%s1 + $0xc] sm:$0xf]
    %v26 = vld [vmem:[%s1 + $0x10] sm:$0xf]
    %v27 = vld [vmem:[%s1 + $0x14] sm:$0xf]
    %v28 = vld [vmem:[%s2] sm:$0xf]
    %v29 = vld [vmem:[%s2 + $0x4] sm:$0xf]
    %v30 = vld [vmem:[%s2 + $0x8] sm:$0xf]
    %v31 = vld [vmem:[%s2 + $0xc] sm:$0xf]
    %v32 = vld [vmem:[%s3] sm:$0x1]
    %v34 = vlaneseq
    %v35 = vshrl.u32 %v34, 7
    %v36 = vsub.s32 0, %v35
    %v37 = vrot.slane %v32, %v36
    %v39 = vld [vmem:[%s4] sm:$0x1]
    %v41 = vlaneseq
    %v42 = vshrl.u32 %v41, 7
    %v43 = vsub.s32 0, %v42
    %v44 = vrot.slane %v39, %v43
    %v46 = vld [vmem:[%s0] sm:$0xf]
    %v47 = vld [vmem:[%s0 + $0x4] sm:$0xf]
    %v50 = vunpack.c.l.b16 %v46
    %v51 = vunpack.c.l.b16 %v47
    %v52 = vpack.c.b16 %v51, %v50
    %v55 = vunpack.c.l.b16 %v26
    %v56 = vunpack.c.l.b16 %v27
    %v57 = vpack.c.b16 %v56, %v55
    %vm59 = vcmask 130048
    %v61 = vsel %vm59, %v52, 0
    %63 = vmatprep.subr.bf16.mxu0 0
    %64 = vmatpush1.bf16.msra.mxu0 %v57
    %65 = vmatprep.subr.bf16.mxu0 0
    %66 = vmatpush1.bf16.msra.mxu0 0
    %67 = vmatprep.subr.bf16.mxu0 0
    %68 = vmatpush1.bf16.msra.mxu0 0
    %69 = vmatprep.subr.bf16.mxu0 0
    %70 = vmatpush1.bf16.msra.mxu0 0
    %71 = vmatprep.subr.bf16.mxu0 0
    %72 = vmatpush1.bf16.msra.mxu0 0
    %73 = vmatprep.subr.bf16.mxu0 0
    %74 = vmatpush1.bf16.msra.mxu0 0
    %75 = vmatprep.subr.bf16.mxu0 0
    %76 = vmatpush1.bf16.msra.mxu0 0
    %77 = vmatprep.subr.bf16.mxu0 0
    %78 = vmatpush1.bf16.msra.mxu0 0
    %79 = vmatprep.subr.bf16.mxu0 0
    %80 = vmatpush1.bf16.msra.mxu0 0
    %81 = vmatprep.subr.bf16.mxu0 0
    %82 = vmatpush1.bf16.msra.mxu0 0
    %83 = vmatprep.subr.bf16.mxu0 0
    %84 = vmatpush1.bf16.msra.mxu0 0
    %85 = vmatprep.subr.bf16.mxu0 0
    %86 = vmatpush1.bf16.msra.mxu0 0
    %87 = vmatprep.subr.bf16.mxu0 0
    %88 = vmatpush1.bf16.msra.mxu0 0
    %89 = vmatprep.subr.bf16.mxu0 0
    %90 = vmatpush1.bf16.msra.mxu0 0
    %91 = vmatprep.subr.bf16.mxu0 0
    %92 = vmatpush1.bf16.msra.mxu0 0
    %93 = vmatprep.subr.bf16.mxu0 0
    %94 = vmatpush1.bf16.msra.mxu0 0
    %95 = vmatprep.mubr.bf16.mxu0 0
    %96 = vmatmul.mubr.bf16.gmra.mrb[0].mxu0 %v61
    %v97 = vpop.f32.mrb[0].mxu0
    %v98 = vadd.f32 %v37, %v97
    %v99 = vpop.f32.mrb[0].mxu0
    %v100 = vpop.f32.mrb[0].mxu0
    %v101 = vadd.f32 %v37, %v100
    %v102 = vpop.f32.mrb[0].mxu0
    %103 = vdwg.mxu0
    %v104 = vmul.f32 %v98, 0.5
    %v105 = vtanh.pop %v104
    %v106 = vmul.f32 %v105, 0.5
    %v107 = vadd.f32 %v106, 0.5
    %v108 = vpack.c.bf16 %v107, %v107
    %v113 = vunpack.c.l.b16 %v22
    %v114 = vunpack.c.l.b16 %v23
    %v115 = vunpack.c.l.b16 %v24
    %v116 = vunpack.c.l.b16 %v25
    %v117 = vpack.c.b16 %v114, %v113
    %v118 = vpack.c.b16 %v116, %v115
    %v122 = vrot.slane %v98, 2
    %vm124 = vcmask 261120
    %v126 = vsel %vm124, %v108, 0
    %128 = vmatprep.subr.bf16.mxu0 0
    %129 = vmatpush1.bf16.msra.mxu0 %v117
    %130 = vmatprep.subr.bf16.mxu0 0
    %131 = vmatpush1.bf16.msra.mxu0 %v118
    %132 = vmatprep.subr.bf16.mxu0 0
    %133 = vmatpush1.bf16.msra.mxu0 0
    %134 = vmatprep.subr.bf16.mxu0 0
    %135 = vmatpush1.bf16.msra.mxu0 0
    %136 = vmatprep.subr.bf16.mxu0 0
    %137 = vmatpush1.bf16.msra.mxu0 0
    %138 = vmatprep.subr.bf16.mxu0 0
    %139 = vmatpush1.bf16.msra.mxu0 0
    %140 = vmatprep.subr.bf16.mxu0 0
    %141 = vmatpush1.bf16.msra.mxu0 0
    %142 = vmatprep.subr.bf16.mxu0 0
    %143 = vmatpush1.bf16.msra.mxu0 0
    %144 = vmatprep.subr.bf16.mxu0 0
    %145 = vmatpush1.bf16.msra.mxu0 0
    %146 = vmatprep.subr.bf16.mxu0 0
    %147 = vmatpush1.bf16.msra.mxu0 0
    %148 = vmatprep.subr.bf16.mxu0 0
    %149 = vmatpush1.bf16.msra.mxu0 0
    %150 = vmatprep.subr.bf16.mxu0 0
    %151 = vmatpush1.bf16.msra.mxu0 0
    %152 = vmatprep.subr.bf16.mxu0 0
    %153 = vmatpush1.bf16.msra.mxu0 0
    %154 = vmatprep.subr.bf16.mxu0 0
    %155 = vmatpush1.bf16.msra.mxu0 0
    %156 = vmatprep.subr.bf16.mxu0 0
    %157 = vmatpush1.bf16.msra.mxu0 0
    %158 = vmatprep.subr.bf16.mxu0 0
    %159 = vmatpush1.bf16.msra.mxu0 0
    %160 = vmatprep.mubr.bf16.mxu0 0
    %161 = vmatmul.mubr.bf16.gmra.mrb[0].mxu0 %v126
    %v162 = vpop.f32.mrb[0].mxu0
    %v163 = vadd.f32 %v122, %v162
    %v164 = vpop.f32.mrb[0].mxu0
    %v165 = vpop.f32.mrb[0].mxu0
    %v166 = vpop.f32.mrb[0].mxu0
    %167 = vdwg.mxu0
    %v168 = vmul.f32 %v163, 0.5
    %v169 = vtanh.pop %v168
    %v170 = vmul.f32 %v169, 0.5
    %v171 = vadd.f32 %v170, 0.5
    %v172 = vpack.c.bf16 %v171, %v171
    %v173 = vrot.slane %v98, 4
    %v176 = vsel %vm124, %v172, 0
    %178 = vmatprep.subr.bf16.mxu0 0
    %179 = vmatpush1.bf16.msra.mxu0 %v117
    %180 = vmatprep.subr.bf16.mxu0 0
    %181 = vmatpush1.bf16.msra.mxu0 %v118
    %182 = vmatprep.subr.bf16.mxu0 0
    %183 = vmatpush1.bf16.msra.mxu0 0
    %184 = vmatprep.subr.bf16.mxu0 0
    %185 = vmatpush1.bf16.msra.mxu0 0
    %186 = vmatprep.subr.bf16.mxu0 0
    %187 = vmatpush1.bf16.msra.mxu0 0
    %188 = vmatprep.subr.bf16.mxu0 0
    %189 = vmatpush1.bf16.msra.mxu0 0
    %190 = vmatprep.subr.bf16.mxu0 0
    %191 = vmatpush1.bf16.msra.mxu0 0
    %192 = vmatprep.subr.bf16.mxu0 0
    %193 = vmatpush1.bf16.msra.mxu0 0
    %194 = vmatprep.subr.bf16.mxu0 0
    %195 = vmatpush1.bf16.msra.mxu0 0
    %196 = vmatprep.subr.bf16.mxu0 0
    %197 = vmatpush1.bf16.msra.mxu0 0
    %198 = vmatprep.subr.bf16.mxu0 0
    %199 = vmatpush1.bf16.msra.mxu0 0
    %200 = vmatprep.subr.bf16.mxu0 0
    %201 = vmatpush1.bf16.msra.mxu0 0
    %202 = vmatprep.subr.bf16.mxu0 0
    %203 = vmatpush1.bf16.msra.mxu0 0
    %204 = vmatprep.subr.bf16.mxu0 0
    %205 = vmatpush1.bf16.msra.mxu0 0
    %206 = vmatprep.subr.bf16.mxu0 0
    %207 = vmatpush1.bf16.msra.mxu0 0
    %208 = vmatprep.subr.bf16.mxu0 0
    %209 = vmatpush1.bf16.msra.mxu0 0
    %210 = vmatprep.mubr.bf16.mxu0 0
    %211 = vmatmul.mubr.bf16.gmra.mrb[0].mxu0 %v176
    %v212 = vpop.f32.mrb[0].mxu0
    %v213 = vadd.f32 %v173, %v212
    %v214 = vpop.f32.mrb[0].mxu0
    %v215 = vpop.f32.mrb[0].mxu0
    %v216 = vpop.f32.mrb[0].mxu0
    %217 = vdwg.mxu0
    %v218 = vmul.f32 %v213, 0.5
    %v219 = vtanh.pop %v218
    %v220 = vmul.f32 %v219, 0.5
    %v221 = vadd.f32 %v220, 0.5
    %v222 = vpack.c.bf16 %v221, %v221
    %v223 = vrot.slane %v98, 6
    %v226 = vsel %vm124, %v222, 0
    %228 = vmatprep.subr.bf16.mxu0 0
    %229 = vmatpush1.bf16.msra.mxu0 %v117
    %230 = vmatprep.subr.bf16.mxu0 0
    %231 = vmatpush1.bf16.msra.mxu0 %v118
    %232 = vmatprep.subr.bf16.mxu0 0
    %233 = vmatpush1.bf16.msra.mxu0 0
    %234 = vmatprep.subr.bf16.mxu0 0
    %235 = vmatpush1.bf16.msra.mxu0 0
    %236 = vmatprep.subr.bf16.mxu0 0
    %237 = vmatpush1.bf16.msra.mxu0 0
    %238 = vmatprep.subr.bf16.mxu0 0
    %239 = vmatpush1.bf16.msra.mxu0 0
    %240 = vmatprep.subr.bf16.mxu0 0
    %241 = vmatpush1.bf16.msra.mxu0 0
    %242 = vmatprep.subr.bf16.mxu0 0
    %243 = vmatpush1.bf16.msra.mxu0 0
    %244 = vmatprep.subr.bf16.mxu0 0
    %245 = vmatpush1.bf16.msra.mxu0 0
    %246 = vmatprep.subr.bf16.mxu0 0
    %247 = vmatpush1.bf16.msra.mxu0 0
    %248 = vmatprep.subr.bf16.mxu0 0
    %249 = vmatpush1.bf16.msra.mxu0 0
    %250 = vmatprep.subr.bf16.mxu0 0
    %251 = vmatpush1.bf16.msra.mxu0 0
    %252 = vmatprep.subr.bf16.mxu0 0
    %253 = vmatpush1.bf16.msra.mxu0 0
    %254 = vmatprep.subr.bf16.mxu0 0
    %255 = vmatpush1.bf16.msra.mxu0 0
    %256 = vmatprep.subr.bf16.mxu0 0
    %257 = vmatpush1.bf16.msra.mxu0 0
    %258 = vmatprep.subr.bf16.mxu0 0
    %259 = vmatpush1.bf16.msra.mxu0 0
    %260 = vmatprep.mubr.bf16.mxu0 0
    %261 = vmatmul.mubr.bf16.gmra.mrb[0].mxu0 %v226
    %v262 = vpop.f32.mrb[0].mxu0
    %v263 = vadd.f32 %v223, %v262
    %v264 = vpop.f32.mrb[0].mxu0
    %v265 = vpop.f32.mrb[0].mxu0
    %v266 = vpop.f32.mrb[0].mxu0
    %267 = vdwg.mxu0
    %v268 = vmul.f32 %v263, 0.5
    %v269 = vtanh.pop %v268
    %v270 = vmul.f32 %v269, 0.5
    %v271 = vadd.f32 %v270, 0.5
    %v272 = vpack.c.bf16 %v271, %v271
    %v274 = vsel %vm124, %v272, 0
    %276 = vmatprep.subr.bf16.mxu0 0
    %277 = vmatpush1.bf16.msra.mxu0 %v117
    %278 = vmatprep.subr.bf16.mxu0 0
    %279 = vmatpush1.bf16.msra.mxu0 %v118
    %280 = vmatprep.subr.bf16.mxu0 0
    %281 = vmatpush1.bf16.msra.mxu0 0
    %282 = vmatprep.subr.bf16.mxu0 0
    %283 = vmatpush1.bf16.msra.mxu0 0
    %284 = vmatprep.subr.bf16.mxu0 0
    %285 = vmatpush1.bf16.msra.mxu0 0
    %286 = vmatprep.subr.bf16.mxu0 0
    %287 = vmatpush1.bf16.msra.mxu0 0
    %288 = vmatprep.subr.bf16.mxu0 0
    %289 = vmatpush1.bf16.msra.mxu0 0
    %290 = vmatprep.subr.bf16.mxu0 0
    %291 = vmatpush1.bf16.msra.mxu0 0
    %292 = vmatprep.subr.bf16.mxu0 0
    %293 = vmatpush1.bf16.msra.mxu0 0
    %294 = vmatprep.subr.bf16.mxu0 0
    %295 = vmatpush1.bf16.msra.mxu0 0
    %296 = vmatprep.subr.bf16.mxu0 0
    %297 = vmatpush1.bf16.msra.mxu0 0
    %298 = vmatprep.subr.bf16.mxu0 0
    %299 = vmatpush1.bf16.msra.mxu0 0
    %300 = vmatprep.subr.bf16.mxu0 0
    %301 = vmatpush1.bf16.msra.mxu0 0
    %302 = vmatprep.subr.bf16.mxu0 0
    %303 = vmatpush1.bf16.msra.mxu0 0
    %304 = vmatprep.subr.bf16.mxu0 0
    %305 = vmatpush1.bf16.msra.mxu0 0
    %306 = vmatprep.subr.bf16.mxu0 0
    %307 = vmatpush1.bf16.msra.mxu0 0
    %308 = vmatprep.mubr.bf16.mxu0 0
    %309 = vmatmul.mubr.bf16.gmra.mrb[0].mxu0 %v274
    %v310 = vpop.f32.mrb[0].mxu0
    %v311 = vadd.f32 %v101, %v310
    %v312 = vpop.f32.mrb[0].mxu0
    %v313 = vpop.f32.mrb[0].mxu0
    %v314 = vpop.f32.mrb[0].mxu0
    %315 = vdwg.mxu0
    %v316 = vmul.f32 %v311, 0.5
    %v317 = vtanh.pop %v316
    %v318 = vmul.f32 %v317, 0.5
    %v319 = vadd.f32 %v318, 0.5
    %v320 = vpack.c.bf16 %v319, %v319
    %v322 = vrot.slane %v101, 2
    %v325 = vsel %vm124, %v320, 0
    %327 = vmatprep.subr.bf16.mxu0 0
    %328 = vmatpush1.bf16.msra.mxu0 %v117
    %329 = vmatprep.subr.bf16.mxu0 0
    %330 = vmatpush1.bf16.msra.mxu0 %v118
    %331 = vmatprep.subr.bf16.mxu0 0
    %332 = vmatpush1.bf16.msra.mxu0 0
    %333 = vmatprep.subr.bf16.mxu0 0
    %334 = vmatpush1.bf16.msra.mxu0 0
    %335 = vmatprep.subr.bf16.mxu0 0
    %336 = vmatpush1.bf16.msra.mxu0 0
    %337 = vmatprep.subr.bf16.mxu0 0
    %338 = vmatpush1.bf16.msra.mxu0 0
    %339 = vmatprep.subr.bf16.mxu0 0
    %340 = vmatpush1.bf16.msra.mxu0 0
    %341 = vmatprep.subr.bf16.mxu0 0
    %342 = vmatpush1.bf16.msra.mxu0 0
    %343 = vmatprep.subr.bf16.mxu0 0
    %344 = vmatpush1.bf16.msra.mxu0 0
    %345 = vmatprep.subr.bf16.mxu0 0
    %346 = vmatpush1.bf16.msra.mxu0 0
    %347 = vmatprep.subr.bf16.mxu0 0
    %348 = vmatpush1.bf16.msra.mxu0 0
    %349 = vmatprep.subr.bf16.mxu0 0
    %350 = vmatpush1.bf16.msra.mxu0 0
    %351 = vmatprep.subr.bf16.mxu0 0
    %352 = vmatpush1.bf16.msra.mxu0 0
    %353 = vmatprep.subr.bf16.mxu0 0
    %354 = vmatpush1.bf16.msra.mxu0 0
    %355 = vmatprep.subr.bf16.mxu0 0
    %356 = vmatpush1.bf16.msra.mxu0 0
    %357 = vmatprep.subr.bf16.mxu0 0
    %358 = vmatpush1.bf16.msra.mxu0 0
    %359 = vmatprep.mubr.bf16.mxu0 0
    %360 = vmatmul.mubr.bf16.gmra.mrb[0].mxu0 %v325
    %v361 = vpop.f32.mrb[0].mxu0
    %v362 = vadd.f32 %v322, %v361
    %v363 = vpop.f32.mrb[0].mxu0
    %v364 = vpop.f32.mrb[0].mxu0
    %v365 = vpop.f32.mrb[0].mxu0
    %366 = vdwg.mxu0
    %v367 = vmul.f32 %v362, 0.5
    %v368 = vtanh.pop %v367
    %v369 = vmul.f32 %v368, 0.5
    %v370 = vadd.f32 %v369, 0.5
    %v371 = vpack.c.bf16 %v370, %v370
    %v372 = vrot.slane %v101, 4
    %v375 = vsel %vm124, %v371, 0
    %377 = vmatprep.subr.bf16.mxu0 0
    %378 = vmatpush1.bf16.msra.mxu0 %v117
    %379 = vmatprep.subr.bf16.mxu0 0
    %380 = vmatpush1.bf16.msra.mxu0 %v118
    %381 = vmatprep.subr.bf16.mxu0 0
    %382 = vmatpush1.bf16.msra.mxu0 0
    %383 = vmatprep.subr.bf16.mxu0 0
    %384 = vmatpush1.bf16.msra.mxu0 0
    %385 = vmatprep.subr.bf16.mxu0 0
    %386 = vmatpush1.bf16.msra.mxu0 0
    %387 = vmatprep.subr.bf16.mxu0 0
    %388 = vmatpush1.bf16.msra.mxu0 0
    %389 = vmatprep.subr.bf16.mxu0 0
    %390 = vmatpush1.bf16.msra.mxu0 0
    %391 = vmatprep.subr.bf16.mxu0 0
    %392 = vmatpush1.bf16.msra.mxu0 0
    %393 = vmatprep.subr.bf16.mxu0 0
    %394 = vmatpush1.bf16.msra.mxu0 0
    %395 = vmatprep.subr.bf16.mxu0 0
    %396 = vmatpush1.bf16.msra.mxu0 0
    %397 = vmatprep.subr.bf16.mxu0 0
    %398 = vmatpush1.bf16.msra.mxu0 0
    %399 = vmatprep.subr.bf16.mxu0 0
    %400 = vmatpush1.bf16.msra.mxu0 0
    %401 = vmatprep.subr.bf16.mxu0 0
    %402 = vmatpush1.bf16.msra.mxu0 0
    %403 = vmatprep.subr.bf16.mxu0 0
    %404 = vmatpush1.bf16.msra.mxu0 0
    %405 = vmatprep.subr.bf16.mxu0 0
    %406 = vmatpush1.bf16.msra.mxu0 0
    %407 = vmatprep.subr.bf16.mxu0 0
    %408 = vmatpush1.bf16.msra.mxu0 0
    %409 = vmatprep.mubr.bf16.mxu0 0
    %410 = vmatmul.mubr.bf16.gmra.mrb[0].mxu0 %v375
    %v411 = vpop.f32.mrb[0].mxu0
    %v412 = vadd.f32 %v372, %v411
    %v413 = vpop.f32.mrb[0].mxu0
    %v414 = vpop.f32.mrb[0].mxu0
    %v415 = vpop.f32.mrb[0].mxu0
    %416 = vdwg.mxu0
    %v417 = vmul.f32 %v412, 0.5
    %v418 = vtanh.pop %v417
    %v419 = vmul.f32 %v418, 0.5
    %v420 = vadd.f32 %v419, 0.5
    %v421 = vpack.c.bf16 %v420, %v420
    %v422 = vrot.slane %v101, 6
    %v425 = vsel %vm124, %v421, 0
    %427 = vmatprep.subr.bf16.mxu0 0
    %428 = vmatpush1.bf16.msra.mxu0 %v117
    %429 = vmatprep.subr.bf16.mxu0 0
    %430 = vmatpush1.bf16.msra.mxu0 %v118
    %431 = vmatprep.subr.bf16.mxu0 0
    %432 = vmatpush1.bf16.msra.mxu0 0
    %433 = vmatprep.subr.bf16.mxu0 0
    %434 = vmatpush1.bf16.msra.mxu0 0
    %435 = vmatprep.subr.bf16.mxu0 0
    %436 = vmatpush1.bf16.msra.mxu0 0
    %437 = vmatprep.subr.bf16.mxu0 0
    %438 = vmatpush1.bf16.msra.mxu0 0
    %439 = vmatprep.subr.bf16.mxu0 0
    %440 = vmatpush1.bf16.msra.mxu0 0
    %441 = vmatprep.subr.bf16.mxu0 0
    %442 = vmatpush1.bf16.msra.mxu0 0
    %443 = vmatprep.subr.bf16.mxu0 0
    %444 = vmatpush1.bf16.msra.mxu0 0
    %445 = vmatprep.subr.bf16.mxu0 0
    %446 = vmatpush1.bf16.msra.mxu0 0
    %447 = vmatprep.subr.bf16.mxu0 0
    %448 = vmatpush1.bf16.msra.mxu0 0
    %449 = vmatprep.subr.bf16.mxu0 0
    %450 = vmatpush1.bf16.msra.mxu0 0
    %451 = vmatprep.subr.bf16.mxu0 0
    %452 = vmatpush1.bf16.msra.mxu0 0
    %453 = vmatprep.subr.bf16.mxu0 0
    %454 = vmatpush1.bf16.msra.mxu0 0
    %455 = vmatprep.subr.bf16.mxu0 0
    %456 = vmatpush1.bf16.msra.mxu0 0
    %457 = vmatprep.subr.bf16.mxu0 0
    %458 = vmatpush1.bf16.msra.mxu0 0
    %459 = vmatprep.mubr.bf16.mxu0 0
    %460 = vmatmul.mubr.bf16.gmra.mrb[0].mxu0 %v425
    %v461 = vpop.f32.mrb[0].mxu0
    %v462 = vadd.f32 %v422, %v461
    %v463 = vpop.f32.mrb[0].mxu0
    %v464 = vpop.f32.mrb[0].mxu0
    %v465 = vpop.f32.mrb[0].mxu0
    %466 = vdwg.mxu0
    %v467 = vmul.f32 %v462, 0.5
    %v468 = vtanh.pop %v467
    %v469 = vmul.f32 %v468, 0.5
    %v470 = vadd.f32 %v469, 0.5
    %v471 = vpack.c.bf16 %v470, %v470
    %v476 = vunpack.c.l.b16 %v28
    %v477 = vunpack.c.l.b16 %v29
    %v478 = vunpack.c.l.b16 %v30
    %v479 = vunpack.c.l.b16 %v31
    %v480 = vpack.c.b16 %v477, %v476
    %v481 = vpack.c.b16 %v479, %v478
    %v485 = vsel %vm124, %v471, 0
    %487 = vmatprep.subr.bf16.mxu0 0
    %488 = vmatpush1.bf16.msra.mxu0 %v480
    %489 = vmatprep.subr.bf16.mxu0 0
    %490 = vmatpush1.bf16.msra.mxu0 %v481
    %491 = vmatprep.subr.bf16.mxu0 0
    %492 = vmatpush1.bf16.msra.mxu0 0
    %493 = vmatprep.subr.bf16.mxu0 0
    %494 = vmatpush1.bf16.msra.mxu0 0
    %495 = vmatprep.subr.bf16.mxu0 0
    %496 = vmatpush1.bf16.msra.mxu0 0
    %497 = vmatprep.subr.bf16.mxu0 0
    %498 = vmatpush1.bf16.msra.mxu0 0
    %499 = vmatprep.subr.bf16.mxu0 0
    %500 = vmatpush1.bf16.msra.mxu0 0
    %501 = vmatprep.subr.bf16.mxu0 0
    %502 = vmatpush1.bf16.msra.mxu0 0
    %503 = vmatprep.subr.bf16.mxu0 0
    %504 = vmatpush1.bf16.msra.mxu0 0
    %505 = vmatprep.subr.bf16.mxu0 0
    %506 = vmatpush1.bf16.msra.mxu0 0
    %507 = vmatprep.subr.bf16.mxu0 0
    %508 = vmatpush1.bf16.msra.mxu0 0
    %509 = vmatprep.subr.bf16.mxu0 0
    %510 = vmatpush1.bf16.msra.mxu0 0
    %511 = vmatprep.subr.bf16.mxu0 0
    %512 = vmatpush1.bf16.msra.mxu0 0
    %513 = vmatprep.subr.bf16.mxu0 0
    %514 = vmatpush1.bf16.msra.mxu0 0
    %515 = vmatprep.subr.bf16.mxu0 0
    %516 = vmatpush1.bf16.msra.mxu0 0
    %517 = vmatprep.subr.bf16.mxu0 0
    %518 = vmatpush1.bf16.msra.mxu0 0
    %519 = vmatprep.mubr.bf16.mxu0 0
    %520 = vmatmul.mubr.bf16.gmra.mrb[0].mxu0 %v485
    %v521 = vpop.f32.mrb[0].mxu0
    %v522 = vadd.f32 %v44, %v521
    %v523 = vpop.f32.mrb[0].mxu0
    %v524 = vpop.f32.mrb[0].mxu0
    %v525 = vpop.f32.mrb[0].mxu0
    %526 = vdwg.mxu0
    %v527 = vmul.f32 %v522, 0.5
    %v528 = vtanh.pop %v527
    %v529 = vmul.f32 %v528, 0.5
    %v530 = vadd.f32 %v529, 0.5
    %532 = vrot.lane.b32.xlu0 %v530, 32
    %v533 = vpop.permute.xlu0 %532
    %v535 = vsel %vm124, %v470, %v533
    %v536 = vpack.c.bf16 %v535, %v535
    %vm537 = vcmask 392192
    %v539 = vsel %vm537, %v536, 0
    %541 = vmatprep.subr.bf16.mxu0 0
    %542 = vmatpush1.bf16.msra.mxu0 %v117
    %543 = vmatprep.subr.bf16.mxu0 0
    %544 = vmatpush1.bf16.msra.mxu0 %v118
    %545 = vmatprep.subr.bf16.mxu0 0
    %546 = vmatpush1.bf16.msra.mxu0 %v57
    %547 = vmatprep.subr.bf16.mxu0 0
    %548 = vmatpush1.bf16.msra.mxu0 0
    %549 = vmatprep.subr.bf16.mxu0 0
    %550 = vmatpush1.bf16.msra.mxu0 0
    %551 = vmatprep.subr.bf16.mxu0 0
    %552 = vmatpush1.bf16.msra.mxu0 0
    %553 = vmatprep.subr.bf16.mxu0 0
    %554 = vmatpush1.bf16.msra.mxu0 0
    %555 = vmatprep.subr.bf16.mxu0 0
    %556 = vmatpush1.bf16.msra.mxu0 0
    %557 = vmatprep.subr.bf16.mxu0 0
    %558 = vmatpush1.bf16.msra.mxu0 0
    %559 = vmatprep.subr.bf16.mxu0 0
    %560 = vmatpush1.bf16.msra.mxu0 0
    %561 = vmatprep.subr.bf16.mxu0 0
    %562 = vmatpush1.bf16.msra.mxu0 0
    %563 = vmatprep.subr.bf16.mxu0 0
    %564 = vmatpush1.bf16.msra.mxu0 0
    %565 = vmatprep.subr.bf16.mxu0 0
    %566 = vmatpush1.bf16.msra.mxu0 0
    %567 = vmatprep.subr.bf16.mxu0 0
    %568 = vmatpush1.bf16.msra.mxu0 0
    %569 = vmatprep.subr.bf16.mxu0 0
    %570 = vmatpush1.bf16.msra.mxu0 0
    %571 = vmatprep.subr.bf16.mxu0 0
    %572 = vmatpush1.bf16.msra.mxu0 0
    %573 = vmatprep.mubr.bf16.mxu0 0
    %574 = vmatmul.mubr.bf16.gmra.mrb[0].mxu0 %v539
    %v575 = vpop.f32.mrb[0].mxu0
    %v576 = vadd.f32 %v37, %v575
    %v577 = vpop.f32.mrb[0].mxu0
    %v578 = vpop.f32.mrb[0].mxu0
    %v579 = vpop.f32.mrb[0].mxu0
    %580 = vdwg.mxu0
    %v581 = vmul.f32 %v576, 0.5
    %v582 = vtanh.pop %v581
    %v583 = vmul.f32 %v582, 0.5
    %v584 = vadd.f32 %v583, 0.5
    %v585 = vpack.c.bf16 %v584, %v584
    %v587 = vsel %vm124, %v585, 0
    %589 = vmatprep.subr.bf16.mxu0 0
    %590 = vmatpush1.bf16.msra.mxu0 %v480
    %591 = vmatprep.subr.bf16.mxu0 0
    %592 = vmatpush1.bf16.msra.mxu0 %v481
    %593 = vmatprep.subr.bf16.mxu0 0
    %594 = vmatpush1.bf16.msra.mxu0 0
    %595 = vmatprep.subr.bf16.mxu0 0
    %596 = vmatpush1.bf16.msra.mxu0 0
    %597 = vmatprep.subr.bf16.mxu0 0
    %598 = vmatpush1.bf16.msra.mxu0 0
    %599 = vmatprep.subr.bf16.mxu0 0
    %600 = vmatpush1.bf16.msra.mxu0 0
    %601 = vmatprep.subr.bf16.mxu0 0
    %602 = vmatpush1.bf16.msra.mxu0 0
    %603 = vmatprep.subr.bf16.mxu0 0
    %604 = vmatpush1.bf16.msra.mxu0 0
    %605 = vmatprep.subr.bf16.mxu0 0
    %606 = vmatpush1.bf16.msra.mxu0 0
    %607 = vmatprep.subr.bf16.mxu0 0
    %608 = vmatpush1.bf16.msra.mxu0 0
    %609 = vmatprep.subr.bf16.mxu0 0
    %610 = vmatpush1.bf16.msra.mxu0 0
    %611 = vmatprep.subr.bf16.mxu0 0
    %612 = vmatpush1.bf16.msra.mxu0 0
    %613 = vmatprep.subr.bf16.mxu0 0
    %614 = vmatpush1.bf16.msra.mxu0 0
    %615 = vmatprep.subr.bf16.mxu0 0
    %616 = vmatpush1.bf16.msra.mxu0 0
    %617 = vmatprep.subr.bf16.mxu0 0
    %618 = vmatpush1.bf16.msra.mxu0 0
    %619 = vmatprep.subr.bf16.mxu0 0
    %620 = vmatpush1.bf16.msra.mxu0 0
    %621 = vmatprep.mubr.bf16.mxu0 0
    %622 = vmatmul.mubr.bf16.gmra.mrb[0].mxu0 %v587
    %v623 = vpop.f32.mrb[0].mxu0
    %v624 = vadd.f32 %v44, %v623
    %v625 = vpop.f32.mrb[0].mxu0
    %v626 = vpop.f32.mrb[0].mxu0
    %v627 = vpop.f32.mrb[0].mxu0
    %628 = vdwg.mxu0
    %v629 = vmul.f32 %v624, 0.5
    %v630 = vtanh.pop %v629
    %v631 = vmul.f32 %v630, 0.5
    %v632 = vadd.f32 %v631, 0.5
    %634 = vrot.lane.b32.xlu0 %v632, 32
    %v635 = vpop.permute.xlu0 %634
    %v637 = vsel %vm124, %v584, %v635
    %v638 = vpack.c.bf16 %v637, %v637
    %v640 = vsel %vm537, %v638, 0
    %642 = vmatprep.subr.bf16.mxu0 0
    %643 = vmatpush1.bf16.msra.mxu0 %v117
    %644 = vmatprep.subr.bf16.mxu0 0
    %645 = vmatpush1.bf16.msra.mxu0 %v118
    %646 = vmatprep.subr.bf16.mxu0 0
    %647 = vmatpush1.bf16.msra.mxu0 %v57
    %648 = vmatprep.subr.bf16.mxu0 0
    %649 = vmatpush1.bf16.msra.mxu0 0
    %650 = vmatprep.subr.bf16.mxu0 0
    %651 = vmatpush1.bf16.msra.mxu0 0
    %652 = vmatprep.subr.bf16.mxu0 0
    %653 = vmatpush1.bf16.msra.mxu0 0
    %654 = vmatprep.subr.bf16.mxu0 0
    %655 = vmatpush1.bf16.msra.mxu0 0
    %656 = vmatprep.subr.bf16.mxu0 0
    %657 = vmatpush1.bf16.msra.mxu0 0
    %658 = vmatprep.subr.bf16.mxu0 0
    %659 = vmatpush1.bf16.msra.mxu0 0
    %660 = vmatprep.subr.bf16.mxu0 0
    %661 = vmatpush1.bf16.msra.mxu0 0
    %662 = vmatprep.subr.bf16.mxu0 0
    %663 = vmatpush1.bf16.msra.mxu0 0
    %664 = vmatprep.subr.bf16.mxu0 0
    %665 = vmatpush1.bf16.msra.mxu0 0
    %666 = vmatprep.subr.bf16.mxu0 0
    %667 = vmatpush1.bf16.msra.mxu0 0
    %668 = vmatprep.subr.bf16.mxu0 0
    %669 = vmatpush1.bf16.msra.mxu0 0
    %670 = vmatprep.subr.bf16.mxu0 0
    %671 = vmatpush1.bf16.msra.mxu0 0
    %672 = vmatprep.subr.bf16.mxu0 0
    %673 = vmatpush1.bf16.msra.mxu0 0
    %674 = vmatprep.mubr.bf16.mxu0 0
    %675 = vmatmul.mubr.bf16.gmra.mrb[0].mxu0 %v640
    %v676 = vpop.f32.mrb[0].mxu0
    %v677 = vadd.f32 %v37, %v676
    %v678 = vpop.f32.mrb[0].mxu0
    %v679 = vpop.f32.mrb[0].mxu0
    %v680 = vpop.f32.mrb[0].mxu0
    %681 = vdwg.mxu0
    %v682 = vmul.f32 %v677, 0.5
    %v683 = vtanh.pop %v682
    %v684 = vmul.f32 %v683, 0.5
    %v685 = vadd.f32 %v684, 0.5
    %v686 = vpack.c.bf16 %v685, %v685
    %v688 = vsel %vm124, %v686, 0
    %690 = vmatprep.subr.bf16.mxu0 0
    %691 = vmatpush1.bf16.msra.mxu0 %v480
    %692 = vmatprep.subr.bf16.mxu0 0
    %693 = vmatpush1.bf16.msra.mxu0 %v481
    %694 = vmatprep.subr.bf16.mxu0 0
    %695 = vmatpush1.bf16.msra.mxu0 0
    %696 = vmatprep.subr.bf16.mxu0 0
    %697 = vmatpush1.bf16.msra.mxu0 0
    %698 = vmatprep.subr.bf16.mxu0 0
    %699 = vmatpush1.bf16.msra.mxu0 0
    %700 = vmatprep.subr.bf16.mxu0 0
    %701 = vmatpush1.bf16.msra.mxu0 0
    %702 = vmatprep.subr.bf16.mxu0 0
    %703 = vmatpush1.bf16.msra.mxu0 0
    %704 = vmatprep.subr.bf16.mxu0 0
    %705 = vmatpush1.bf16.msra.mxu0 0
    %706 = vmatprep.subr.bf16.mxu0 0
    %707 = vmatpush1.bf16.msra.mxu0 0
    %708 = vmatprep.subr.bf16.mxu0 0
    %709 = vmatpush1.bf16.msra.mxu0 0
    %710 = vmatprep.subr.bf16.mxu0 0
    %711 = vmatpush1.bf16.msra.mxu0 0
    %712 = vmatprep.subr.bf16.mxu0 0
    %713 = vmatpush1.bf16.msra.mxu0 0
    %714 = vmatprep.subr.bf16.mxu0 0
    %715 = vmatpush1.bf16.msra.mxu0 0
    %716 = vmatprep.subr.bf16.mxu0 0
    %717 = vmatpush1.bf16.msra.mxu0 0
    %718 = vmatprep.subr.bf16.mxu0 0
    %719 = vmatpush1.bf16.msra.mxu0 0
    %720 = vmatprep.subr.bf16.mxu0 0
    %721 = vmatpush1.bf16.msra.mxu0 0
    %722 = vmatprep.mubr.bf16.mxu0 0
    %723 = vmatmul.mubr.bf16.gmra.mrb[0].mxu0 %v688
    %v724 = vpop.f32.mrb[0].mxu0
    %v725 = vadd.f32 %v44, %v724
    %v726 = vpop.f32.mrb[0].mxu0
    %v727 = vpop.f32.mrb[0].mxu0
    %v728 = vpop.f32.mrb[0].mxu0
    %729 = vdwg.mxu0
    %v730 = vmul.f32 %v725, 0.5
    %v731 = vtanh.pop %v730
    %v732 = vmul.f32 %v731, 0.5
    %v733 = vadd.f32 %v732, 0.5
    %735 = vrot.lane.b32.xlu0 %v733, 32
    %v736 = vpop.permute.xlu0 %735
    %v738 = vsel %vm124, %v685, %v736
    %v739 = vpack.c.bf16 %v738, %v738
    %v741 = vsel %vm537, %v739, 0
    %743 = vmatprep.subr.bf16.mxu0 0
    %744 = vmatpush1.bf16.msra.mxu0 %v117
    %745 = vmatprep.subr.bf16.mxu0 0
    %746 = vmatpush1.bf16.msra.mxu0 %v118
    %747 = vmatprep.subr.bf16.mxu0 0
    %748 = vmatpush1.bf16.msra.mxu0 %v57
    %749 = vmatprep.subr.bf16.mxu0 0
    %750 = vmatpush1.bf16.msra.mxu0 0
    %751 = vmatprep.subr.bf16.mxu0 0
    %752 = vmatpush1.bf16.msra.mxu0 0
    %753 = vmatprep.subr.bf16.mxu0 0
    %754 = vmatpush1.bf16.msra.mxu0 0
    %755 = vmatprep.subr.bf16.mxu0 0
    %756 = vmatpush1.bf16.msra.mxu0 0
    %757 = vmatprep.subr.bf16.mxu0 0
    %758 = vmatpush1.bf16.msra.mxu0 0
    %759 = vmatprep.subr.bf16.mxu0 0
    %760 = vmatpush1.bf16.msra.mxu0 0
    %761 = vmatprep.subr.bf16.mxu0 0
    %762 = vmatpush1.bf16.msra.mxu0 0
    %763 = vmatprep.subr.bf16.mxu0 0
    %764 = vmatpush1.bf16.msra.mxu0 0
    %765 = vmatprep.subr.bf16.mxu0 0
    %766 = vmatpush1.bf16.msra.mxu0 0
    %767 = vmatprep.subr.bf16.mxu0 0
    %768 = vmatpush1.bf16.msra.mxu0 0
    %769 = vmatprep.subr.bf16.mxu0 0
    %770 = vmatpush1.bf16.msra.mxu0 0
    %771 = vmatprep.subr.bf16.mxu0 0
    %772 = vmatpush1.bf16.msra.mxu0 0
    %773 = vmatprep.subr.bf16.mxu0 0
    %774 = vmatpush1.bf16.msra.mxu0 0
    %775 = vmatprep.mubr.bf16.mxu0 0
    %776 = vmatmul.mubr.bf16.gmra.mrb[0].mxu0 %v741
    %v777 = vpop.f32.mrb[0].mxu0
    %v778 = vadd.f32 %v37, %v777
    %v779 = vpop.f32.mrb[0].mxu0
    %v780 = vpop.f32.mrb[0].mxu0
    %v781 = vpop.f32.mrb[0].mxu0
    %782 = vdwg.mxu0
    %v783 = vmul.f32 %v778, 0.5
    %v784 = vtanh.pop %v783
    %v785 = vmul.f32 %v784, 0.5
    %v786 = vadd.f32 %v785, 0.5
    %v787 = vpack.c.bf16 %v786, %v786
    %v789 = vsel %vm124, %v787, 0
    %791 = vmatprep.subr.bf16.mxu0 0
    %792 = vmatpush1.bf16.msra.mxu0 %v480
    %793 = vmatprep.subr.bf16.mxu0 0
    %794 = vmatpush1.bf16.msra.mxu0 %v481
    %795 = vmatprep.subr.bf16.mxu0 0
    %796 = vmatpush1.bf16.msra.mxu0 0
    %797 = vmatprep.subr.bf16.mxu0 0
    %798 = vmatpush1.bf16.msra.mxu0 0
    %799 = vmatprep.subr.bf16.mxu0 0
    %800 = vmatpush1.bf16.msra.mxu0 0
    %801 = vmatprep.subr.bf16.mxu0 0
    %802 = vmatpush1.bf16.msra.mxu0 0
    %803 = vmatprep.subr.bf16.mxu0 0
    %804 = vmatpush1.bf16.msra.mxu0 0
    %805 = vmatprep.subr.bf16.mxu0 0
    %806 = vmatpush1.bf16.msra.mxu0 0
    %807 = vmatprep.subr.bf16.mxu0 0
    %808 = vmatpush1.bf16.msra.mxu0 0
    %809 = vmatprep.subr.bf16.mxu0 0
    %810 = vmatpush1.bf16.msra.mxu0 0
    %811 = vmatprep.subr.bf16.mxu0 0
    %812 = vmatpush1.bf16.msra.mxu0 0
    %813 = vmatprep.subr.bf16.mxu0 0
    %814 = vmatpush1.bf16.msra.mxu0 0
    %815 = vmatprep.subr.bf16.mxu0 0
    %816 = vmatpush1.bf16.msra.mxu0 0
    %817 = vmatprep.subr.bf16.mxu0 0
    %818 = vmatpush1.bf16.msra.mxu0 0
    %819 = vmatprep.subr.bf16.mxu0 0
    %820 = vmatpush1.bf16.msra.mxu0 0
    %821 = vmatprep.subr.bf16.mxu0 0
    %822 = vmatpush1.bf16.msra.mxu0 0
    %823 = vmatprep.mubr.bf16.mxu0 0
    %824 = vmatmul.mubr.bf16.gmra.mrb[0].mxu0 %v789
    %v825 = vpop.f32.mrb[0].mxu0
    %v826 = vadd.f32 %v44, %v825
    %v827 = vpop.f32.mrb[0].mxu0
    %v828 = vpop.f32.mrb[0].mxu0
    %v829 = vpop.f32.mrb[0].mxu0
    %830 = vdwg.mxu0
    %v831 = vmul.f32 %v826, 0.5
    %v832 = vtanh.pop %v831
    %v833 = vmul.f32 %v832, 0.5
    %v834 = vadd.f32 %v833, 0.5
    %836 = vrot.lane.b32.xlu0 %v834, 32
    %v837 = vpop.permute.xlu0 %836
    %v839 = vsel %vm124, %v786, %v837
    %v840 = vpack.c.bf16 %v839, %v839
    %v842 = vsel %vm537, %v840, 0
    %844 = vmatprep.subr.bf16.mxu0 0
    %845 = vmatpush1.bf16.msra.mxu0 %v117
    %846 = vmatprep.subr.bf16.mxu0 0
    %847 = vmatpush1.bf16.msra.mxu0 %v118
    %848 = vmatprep.subr.bf16.mxu0 0
    %849 = vmatpush1.bf16.msra.mxu0 %v57
    %850 = vmatprep.subr.bf16.mxu0 0
    %851 = vmatpush1.bf16.msra.mxu0 0
    %852 = vmatprep.subr.bf16.mxu0 0
    %853 = vmatpush1.bf16.msra.mxu0 0
    %854 = vmatprep.subr.bf16.mxu0 0
    %855 = vmatpush1.bf16.msra.mxu0 0
    %856 = vmatprep.subr.bf16.mxu0 0
    %857 = vmatpush1.bf16.msra.mxu0 0
    %858 = vmatprep.subr.bf16.mxu0 0
    %859 = vmatpush1.bf16.msra.mxu0 0
    %860 = vmatprep.subr.bf16.mxu0 0
    %861 = vmatpush1.bf16.msra.mxu0 0
    %862 = vmatprep.subr.bf16.mxu0 0
    %863 = vmatpush1.bf16.msra.mxu0 0
    %864 = vmatprep.subr.bf16.mxu0 0
    %865 = vmatpush1.bf16.msra.mxu0 0
    %866 = vmatprep.subr.bf16.mxu0 0
    %867 = vmatpush1.bf16.msra.mxu0 0
    %868 = vmatprep.subr.bf16.mxu0 0
    %869 = vmatpush1.bf16.msra.mxu0 0
    %870 = vmatprep.subr.bf16.mxu0 0
    %871 = vmatpush1.bf16.msra.mxu0 0
    %872 = vmatprep.subr.bf16.mxu0 0
    %873 = vmatpush1.bf16.msra.mxu0 0
    %874 = vmatprep.subr.bf16.mxu0 0
    %875 = vmatpush1.bf16.msra.mxu0 0
    %876 = vmatprep.mubr.bf16.mxu0 0
    %877 = vmatmul.mubr.bf16.gmra.mrb[0].mxu0 %v842
    %v878 = vpop.f32.mrb[0].mxu0
    %v879 = vadd.f32 %v37, %v878
    %v880 = vpop.f32.mrb[0].mxu0
    %v881 = vpop.f32.mrb[0].mxu0
    %v882 = vpop.f32.mrb[0].mxu0
    %883 = vdwg.mxu0
    %v884 = vmul.f32 %v879, 0.5
    %v885 = vtanh.pop %v884
    %v886 = vmul.f32 %v885, 0.5
    %v887 = vadd.f32 %v886, 0.5
    %v888 = vpack.c.bf16 %v887, %v887
    %v890 = vsel %vm124, %v888, 0
    %892 = vmatprep.subr.bf16.mxu0 0
    %893 = vmatpush1.bf16.msra.mxu0 %v480
    %894 = vmatprep.subr.bf16.mxu0 0
    %895 = vmatpush1.bf16.msra.mxu0 %v481
    %896 = vmatprep.subr.bf16.mxu0 0
    %897 = vmatpush1.bf16.msra.mxu0 0
    %898 = vmatprep.subr.bf16.mxu0 0
    %899 = vmatpush1.bf16.msra.mxu0 0
    %900 = vmatprep.subr.bf16.mxu0 0
    %901 = vmatpush1.bf16.msra.mxu0 0
    %902 = vmatprep.subr.bf16.mxu0 0
    %903 = vmatpush1.bf16.msra.mxu0 0
    %904 = vmatprep.subr.bf16.mxu0 0
    %905 = vmatpush1.bf16.msra.mxu0 0
    %906 = vmatprep.subr.bf16.mxu0 0
    %907 = vmatpush1.bf16.msra.mxu0 0
    %908 = vmatprep.subr.bf16.mxu0 0
    %909 = vmatpush1.bf16.msra.mxu0 0
    %910 = vmatprep.subr.bf16.mxu0 0
    %911 = vmatpush1.bf16.msra.mxu0 0
    %912 = vmatprep.subr.bf16.mxu0 0
    %913 = vmatpush1.bf16.msra.mxu0 0
    %914 = vmatprep.subr.bf16.mxu0 0
    %915 = vmatpush1.bf16.msra.mxu0 0
    %916 = vmatprep.subr.bf16.mxu0 0
    %917 = vmatpush1.bf16.msra.mxu0 0
    %918 = vmatprep.subr.bf16.mxu0 0
    %919 = vmatpush1.bf16.msra.mxu0 0
    %920 = vmatprep.subr.bf16.mxu0 0
    %921 = vmatpush1.bf16.msra.mxu0 0
    %922 = vmatprep.subr.bf16.mxu0 0
    %923 = vmatpush1.bf16.msra.mxu0 0
    %924 = vmatprep.mubr.bf16.mxu0 0
    %925 = vmatmul.mubr.bf16.gmra.mrb[0].mxu0 %v890
    %v926 = vpop.f32.mrb[0].mxu0
    %v927 = vadd.f32 %v44, %v926
    %v928 = vpop.f32.mrb[0].mxu0
    %v929 = vpop.f32.mrb[0].mxu0
    %v930 = vpop.f32.mrb[0].mxu0
    %931 = vdwg.mxu0
    %v932 = vmul.f32 %v927, 0.5
    %v933 = vtanh.pop %v932
    %v934 = vmul.f32 %v933, 0.5
    %v935 = vadd.f32 %v934, 0.5
    %vm936 = vcmask 123904
    %937 = vst.msk [vmem:[#allocation2] sm:$0x3] %vm936, %v632
    %938 = vst.msk [vmem:[#allocation2 + $0x2] sm:$0x3] %vm936, %v733
    %939 = vst.msk [vmem:[#allocation2 + $0x4] sm:$0x3] %vm936, %v834
    %940 = vst.msk [vmem:[#allocation2 + $0x6] sm:$0x3] %vm936, %v935
    // Predicated region
    $region22: #{tpu_custom_call.1} parent=1 // pred_check
      _
    $region23: #{tpu_custom_call.1} parent=1 // pred_check_branch
      %942 = sbr.rel (0) target = $region25
    $region24: #{tpu_custom_call.1} parent=1 // pred_region
      %s944 = ssub.s32 128, 128
      %945 = vsyncadd [#allocation3], %s944
      %s946 = sshll.u32 [#allocation2], 4
      %s947 = int_to_ptr.vmem [resolvable:$true] %s946
      %952 = dma.vmem_to_hbm [thread:$0]  %s947, 128, %s5, [#allocation3], 32, 32, 2
    $region25: #{tpu_custom_call.1} parent=1 // pred_fallthru
      _
    // Predicated region
    $region26: #{tpu_custom_call.1} parent=1 // pred_check
      _
    $region27: #{tpu_custom_call.1} parent=1 // pred_check_branch
      %954 = sbr.rel (0) target = $region29
    $region28: #{tpu_custom_call.1} parent=1 // pred_region
      %955 = dma.done [#allocation3], 128
    $region29: #{tpu_custom_call.1} parent=1 // pred_fallthru
      _
    %956 = vsyncpa [#allocation3], 1

</llo_original>
